<compile_context>
chip_gen: v5e
topology: v5e:2x2
jax: 0.10.0
libtpu: 0.0.40
codegen_flags: <defaults>
</compile_context>

<pallas_src>
import functools

import jax
import jax.numpy as jnp
from jax import lax
from jax.experimental import pallas as pl
from jax.experimental.pallas import tpu as pltpu


def _round_up(x, m):
    return ((x + m - 1) // m) * m


def _fmix32(x):
    """Murmur3 32-bit finalizer (uint32, wrapping) — avalanching integer hash."""
    x = x ^ (x >> 16)
    x = x * jnp.uint32(0x85EBCA6B)
    x = x ^ (x >> 13)
    x = x * jnp.uint32(0xC2B2AE35)
    x = x ^ (x >> 16)
    return x


def _vmem_capacity_bytes():
    """Physical VMEM of the attached TPU; conservative (v7x-sized) if unknown."""
    try:
        return int(pltpu.get_tpu_info().vmem_capacity_bytes)
    except Exception:
        return 64 * 1024 * 1024


def _pallas_call_maybe_cost(kernel, *, flops, bytes_accessed, **kwargs):
    """pl.pallas_call with cost_estimate when the installed JAX supports it."""
    ce_cls = getattr(pl, "CostEstimate", None)
    if ce_cls is not None:
        try:
            ce = ce_cls(flops=flops, bytes_accessed=bytes_accessed, transcendentals=0)
            return pl.pallas_call(kernel, cost_estimate=ce, **kwargs)
        except TypeError:
            pass
    return pl.pallas_call(kernel, **kwargs)


def _custom_linear_kernel(seed_ref, x_ref, w_ref, b_ref, o_ref, *,
                          p, apply_dropout, n_total):
    """One (tm, tn) output tile of dropout(relu(x @ W.T + b)).

    x_ref: (tm, tk)  activations
    w_ref: (tk, tn)  pre-transposed weights (canonical MXU contraction, no XLU pass)
    b_ref: (1, tn)   bias (f32)
    o_ref: (tm, tn)  f32 output block, resident across the K grid axis and used
                     directly as the accumulator (no separate VMEM scratch).
    """
    k = pl.program_id(2)
    tm, tn = o_ref.shape

    # Hoisted out of the pl.when epilogue: program_id inside a cond branch has no
    # lowering on the CPU/interpret fallback path (this was the previous crash),
    # and hoisting keeps the per-element work in the epilogue to the hash itself.
    if apply_dropout:
        row_off = (pl.program_id(0) * tm).astype(jnp.uint32)
        col_off = (pl.program_id(1) * tn).astype(jnp.uint32)
        seed_u = seed_ref[0].astype(jnp.uint32) * jnp.uint32(0x9E3779B9)

    @pl.when(k == 0)
    def _():
        o_ref[...] = jnp.zeros_like(o_ref)

    # x @ W.T via pre-transposed W: contract last dim of x with first dim of w.
    o_ref[...] += lax.dot_general(
        x_ref[...], w_ref[...],
        dimension_numbers=(((1,), (0,)), ((), ())),
        preferred_element_type=jnp.float32)

    @pl.when(k == pl.num_programs(2) - 1)
    def _():
        y = jnp.maximum(o_ref[...] + b_ref[...], 0.0)
        if apply_dropout:
            # Global element index in uint32 (no int32 overflow for huge padded
            # M*N); counter-based hash => mask independent across tiles with no
            # per-tile re-seeding cost.
            rows = lax.broadcasted_iota(jnp.int32, (tm, tn), 0).astype(jnp.uint32) + row_off
            cols = lax.broadcasted_iota(jnp.int32, (tm, tn), 1).astype(jnp.uint32) + col_off
            idx = rows * jnp.uint32(n_total) + cols
            # TODO(synk): RNG stream differs from torch's dropout RNG; Bernoulli
            # keep-prob (1 - p) and 1/(1-p) scaling semantics match, exact mask
            # does not.
            bits = _fmix32(idx ^ seed_u)
            # keep prob = 1 - p via integer compare on the low 24 bits
            # (floor(p * 2^24) threshold: bias < 6e-8, negligible).
            threshold = jnp.uint32(int(p * (1 << 24)))
            keep = (bits & jnp.uint32(0x00FFFFFF)) >= threshold
            y = jnp.where(keep, y * jnp.float32(1.0 / (1.0 - p)), 0.0)
        o_ref[...] = y


def custom_linear_forward(x, w, b, *, p=0.5, training=False, seed=0,
                          compute_dtype=None):
    """Pallas implementation of CustomLinear.forward.

    x: [B, in_features]                 float32
    w: [out_features, in_features]      float32 (PyTorch nn.Linear layout)
    b: [out_features]                   float32
    compute_dtype: optional matmul-operand dtype (e.g. jnp.bfloat16 on v6e/v7x);
                   accumulation is always f32.  Default keeps f32 numerics.
    """
    B, K = x.shape
    N, Kw = w.shape
    assert Kw == K, "weight/input feature mismatch"
    out_dtype = x.dtype

    if training and p >= 1.0:
        # torch.nn.Dropout(p=1) zeroes everything; avoid inf scale in-kernel.
        return jnp.zeros((B, N), dtype=out_dtype)
    apply_dropout = bool(training) and float(p) > 0.0

    # Generation-aware tile sizes.  v5e/v6e (128 MiB VMEM) get wider N/K tiles and
    # a higher scoped-VMEM limit; v7x (64 MiB) / unknown stays conservative.
    big_vmem = _vmem_capacity_bytes() >= 96 * 1024 * 1024
    tm = min(512, _round_up(B, 8))                       # avoid gross M over-padding
    tn = min(1024 if big_vmem else 512, _round_up(N, 128))
    tk = min(2048 if big_vmem else 1024, _round_up(K, 128))

    Bp = _round_up(B, tm)
    Np = _round_up(N, tn)
    Kp = _round_up(K, tk)

    # v7x has 2 TensorCores: if one tile would cover all of (M, N), split N into
    # two tn blocks so the second core is not idle.
    if Bp // tm == 1 and Np // tn == 1 and Np >= 256:
        tn = _round_up(Np // 2, 128)
        Np = _round_up(N, tn)

    cdt = jnp.dtype(compute_dtype) if compute_dtype is not None else x.dtype

    xp = jnp.pad(x, ((0, Bp - B), (0, Kp - K))).astype(cdt)
    # Pre-transposed (K, N) weight layout -> canonical MXU contraction in the kernel.
    # TODO(synk): in a real model, hoist this pad+transpose (and the bias pad) to
    # parameter setup so it is not an extra HBM pass on every forward call.
    wp = jnp.pad(w.T, ((0, Kp - K), (0, Np - N))).astype(cdt)
    bp = jnp.pad(b, (0, Np - N)).reshape(1, Np).astype(jnp.float32)
    seed_arr = jnp.asarray([seed], dtype=jnp.int32)

    grid = (Bp // tm, Np // tn, Kp // tk)

    grid_spec = pltpu.PrefetchScalarGridSpec(
        num_scalar_prefetch=1,
        grid=grid,
        in_specs=[
            pl.BlockSpec((tm, tk), lambda i, j, k, s: (i, k)),
            pl.BlockSpec((tk, tn), lambda i, j, k, s: (k, j)),
            pl.BlockSpec((1, tn), lambda i, j, k, s: (0, j)),
        ],
        out_specs=pl.BlockSpec((tm, tn), lambda i, j, k, s: (i, j)),
    )

    kernel = functools.partial(
        _custom_linear_kernel,
        p=float(p), apply_dropout=apply_dropout, n_total=Np)

    itemsize = jnp.dtype(cdt).itemsize
    flops = 2 * Bp * Np * Kp
    bytes_accessed = (Bp * Kp + Kp * Np) * itemsize + (Np + Bp * Np) * 4

    out = _pallas_call_maybe_cost(
        kernel,
        flops=flops,
        bytes_accessed=bytes_accessed,
        out_shape=jax.ShapeDtypeStruct((Bp, Np), jnp.float32),
        grid_spec=grid_spec,
        compiler_params=pltpu.CompilerParams(
            dimension_semantics=("parallel", "parallel", "arbitrary"),
            vmem_limit_bytes=(80 if big_vmem else 48) * 1024 * 1024),
    )(seed_arr, xp, wp, bp)

    return out[:B, :N].astype(out_dtype)


if __name__ == "__main__":
    key = jax.random.PRNGKey(0)
    kx, kw, kb = jax.random.split(key, 3)

    B, in_features, out_features = 8, 32, 32
    p = 0.5

    x = jax.random.normal(kx, (B, in_features), dtype=jnp.float32)
    # deterministic parameter init (Kaiming-uniform-ish scale, fixed key)
    bound = 1.0 / (in_features ** 0.5)
    w = jax.random.uniform(kw, (out_features, in_features), jnp.float32, -bound, bound)
    b = jax.random.uniform(kb, (out_features,), jnp.float32, -bound, bound)

    # eval-mode forward (dropout = identity) — check against pure-JAX reference
    y_eval = jax.block_until_ready(custom_linear_forward(x, w, b, p=p, training=False))
    y_ref = jnp.maximum(x @ w.T + b, 0.0)
    assert y_eval.shape == (B, out_features)
    assert jnp.allclose(y_eval, y_ref, atol=1e-4, rtol=1e-4), "eval-mode mismatch"

    # train-mode forward (dropout active, inverted scaling)
    y_train = jax.block_until_ready(
        custom_linear_forward(x, w, b, p=p, training=True, seed=1234))
    assert y_train.shape == (B, out_features)
    # every train-mode output is either 0 (dropped) or eval output / (1 - p)
    scaled = y_ref / (1.0 - p)
    ok = jnp.isclose(y_train, 0.0, atol=1e-6) | jnp.isclose(y_train, scaled,
                                                            atol=1e-4, rtol=1e-4)
    assert bool(jnp.all(ok)), "train-mode dropout values inconsistent"
    # the mask must actually drop some and keep some positive activations
    pos = y_ref > 1e-6
    kept = (jnp.abs(y_train) > 1e-6) & pos
    n_pos, n_kept = int(jnp.sum(pos)), int(jnp.sum(kept))
    assert 0 < n_kept < n_pos, "dropout mask degenerate (all kept or all dropped)"

    print("KERNEL_OK")
</pallas_src>

<mosaic_0001>
module attributes {stable_mosaic.version = 11 : i64} {
  func.func @_custom_linear_kernel(%arg0: i32, %arg1: i32, %arg2: i32, %arg3: memref<1xi32, #tpu.memory_space<smem>>, %arg4: memref<8x128xf32, #tpu.memory_space<vmem>>, %arg5: memref<128x128xf32, #tpu.memory_space<vmem>>, %arg6: memref<1x128xf32, #tpu.memory_space<vmem>>, %arg7: memref<8x128xf32, #tpu.memory_space<vmem>>) attributes {dimension_semantics = [#tpu.dimension_semantics<parallel>, #tpu.dimension_semantics<parallel>, #tpu.dimension_semantics<arbitrary>], iteration_bounds = array<i64: 1, 1, 1>, scalar_prefetch = 1 : i64, scratch_operands = 0 : i64, tpu.core_type = #tpu.core_type<tc>, window_params = [{transform_indices = @transform_0, window_bounds = array<i64: 8, 128>}, {transform_indices = @transform_1, window_bounds = array<i64: 128, 128>}, {transform_indices = @transform_2, window_bounds = array<i64: 1, 128>}, {transform_indices = @transform_3, window_bounds = array<i64: 8, 128>}]} {
    %c0_i32 = arith.constant 0 : i32
    %0 = arith.cmpi eq, %arg2, %c0_i32 : i32
    %1 = arith.extui %0 : i1 to i32
    %c0_i32_0 = arith.constant 0 : i32
    %2 = arith.cmpi ne, %1, %c0_i32_0 : i32
    scf.if %2 {
      %cst_10 = arith.constant 0.000000e+00 : f32
      %12 = vector.broadcast %cst_10 : f32 to vector<8x128xf32>
      %c0_11 = arith.constant 0 : index
      %c0_12 = arith.constant 0 : index
      %13 = vector.load %arg7[%c0_11, %c0_12] : memref<8x128xf32, #tpu.memory_space<vmem>>, vector<8x128xf32>
      tpu.vector_store %arg7[%c0_11, %c0_12], %12 {strides = array<i32>} : memref<8x128xf32, #tpu.memory_space<vmem>>, vector<8x128xf32>,
    } else {
    }
    %c0 = arith.constant 0 : index
    %c0_1 = arith.constant 0 : index
    %3 = vector.load %arg7[%c0, %c0_1] : memref<8x128xf32, #tpu.memory_space<vmem>>, vector<8x128xf32>
    %c0_2 = arith.constant 0 : index
    %c0_3 = arith.constant 0 : index
    %4 = vector.load %arg4[%c0_2, %c0_3] : memref<8x128xf32, #tpu.memory_space<vmem>>, vector<8x128xf32>
    %c0_4 = arith.constant 0 : index
    %c0_5 = arith.constant 0 : index
    %5 = vector.load %arg5[%c0_4, %c0_5] : memref<128x128xf32, #tpu.memory_space<vmem>>, vector<128x128xf32>
    %cst = arith.constant dense<0.000000e+00> : vector<8x128xf32>
    %6 = tpu.matmul %4, %5, %cst {dimension_numbers = #tpu.dot_dimension_numbers<[1], [0], [0], [1], [0, 0, 1, 1], [], []>} : vector<8x128xf32>, vector<128x128xf32>, vector<8x128xf32> -> vector<8x128xf32>
    %7 = arith.addf %3, %6 : vector<8x128xf32>
    %c0_6 = arith.constant 0 : index
    %c0_7 = arith.constant 0 : index
    %8 = vector.load %arg7[%c0_6, %c0_7] : memref<8x128xf32, #tpu.memory_space<vmem>>, vector<8x128xf32>
    tpu.vector_store %arg7[%c0_6, %c0_7], %7 {strides = array<i32>} : memref<8x128xf32, #tpu.memory_space<vmem>>, vector<8x128xf32>,
    %c0_i32_8 = arith.constant 0 : i32
    %9 = arith.cmpi eq, %arg2, %c0_i32_8 : i32
    %10 = arith.extui %9 : i1 to i32
    %c0_i32_9 = arith.constant 0 : i32
    %11 = arith.cmpi ne, %10, %c0_i32_9 : i32
    scf.if %11 {
      %c0_10 = arith.constant 0 : index
      %c0_11 = arith.constant 0 : index
      %12 = vector.load %arg7[%c0_10, %c0_11] : memref<8x128xf32, #tpu.memory_space<vmem>>, vector<8x128xf32>
      %c0_12 = arith.constant 0 : index
      %c0_13 = arith.constant 0 : index
      %13 = vector.load %arg6[%c0_12, %c0_13] : memref<1x128xf32, #tpu.memory_space<vmem>>, vector<1x128xf32>
      %14 = vector.broadcast %13 : vector<1x128xf32> to vector<8x128xf32>
      %15 = arith.addf %12, %14 : vector<8x128xf32>
      %cst_14 = arith.constant 0.000000e+00 : f32
      %16 = vector.broadcast %cst_14 : f32 to vector<8x128xf32>
      %17 = arith.maximumf %15, %16 : vector<8x128xf32>
      %c0_15 = arith.constant 0 : index
      %c0_16 = arith.constant 0 : index
      %18 = vector.load %arg7[%c0_15, %c0_16] : memref<8x128xf32, #tpu.memory_space<vmem>>, vector<8x128xf32>
      tpu.vector_store %arg7[%c0_15, %c0_16], %17 {strides = array<i32>} : memref<8x128xf32, #tpu.memory_space<vmem>>, vector<8x128xf32>,
    } else {
    }
    return
  }
  func.func @transform_0(%arg0: i32, %arg1: i32, %arg2: i32, %arg3: memref<1xi32, #tpu.memory_space<smem>>) -> (i32, i32) {
    %c0_i32 = arith.constant 0 : i32
    return %arg0, %arg2 : i32, i32
  }
  func.func @transform_1(%arg0: i32, %arg1: i32, %arg2: i32, %arg3: memref<1xi32, #tpu.memory_space<smem>>) -> (i32, i32) {
    %c0_i32 = arith.constant 0 : i32
    return %arg2, %arg1 : i32, i32
  }
  func.func @transform_2(%arg0: i32, %arg1: i32, %arg2: i32, %arg3: memref<1xi32, #tpu.memory_space<smem>>) -> (i32, i32) {
    %c0_i32 = arith.constant 0 : i32
    %c0_i32_0 = arith.constant 0 : i32
    return %c0_i32, %arg1 : i32, i32
  }
  func.func @transform_3(%arg0: i32, %arg1: i32, %arg2: i32, %arg3: memref<1xi32, #tpu.memory_space<smem>>) -> (i32, i32) {
    %c0_i32 = arith.constant 0 : i32
    return %arg0, %arg1 : i32, i32
  }
}

</mosaic_0001>

<llo_original>
// kernel: tpu_custom_call.1
$region0: #{tpu_custom_call.1}
  #allocation0 [shape = 'u32[]', space=smem, size = 0x4, offset = 0x4, fixed_abs, tag = 'smem constant byte address 0x4 - core index']
  #allocation1 [shape = 'u32[72,128]{1,0:T(1,128)}', space=vmem, size = 0x9000, scoped, tag = 'internal scratch']
  #allocation2 [shape = 's32[1]{0}', space=sflag, size = 0x4, scoped, tag = 'scoped memory for tpu_custom_call.1']
  #allocation3 [shape = 's32[1]{0:T(128)S(6)}', space=smem, size = 0x200, scoped, tag = 'prefetched SMEM operand 0']
  %s0 = inlined_call_operand.<no memory space> [shape: s32[1], index: 0, kind: input, shape index: {}]
  %s1 = inlined_call_operand.hbm [shape: f32[8,128], index: 1, kind: input, shape index: {}]
  %s2 = inlined_call_operand.hbm [shape: f32[128,128], index: 2, kind: input, shape index: {}]
  %s3 = inlined_call_operand.vmem [shape: f32[1,128], index: 3, kind: input, shape index: {}]
  %s4 = inlined_call_operand.hbm [shape: f32[8,128], index: 4, kind: output, shape index: {}]
  %s5 = sld [smem:[#allocation0]]
  $region38: #{tpu_custom_call.1} parent=0
    _
  %s7 = ssub.s32 1, %s5
  %s8 = scalar_select 0, %s7, %s5
  %9 = sst [smem:[#allocation3]] %s0
  $region1: #{tpu_custom_call.1} parent=0
    #allocation4 [shape = 'u8[4096]{0}', space=vmem, size = 0x1000, scoped, tag = 'input window, operand 1, single buffered']
    #allocation5 [shape = 's32[1]{0}', space=sflag, size = 0x4, scoped, tag = 'scoped memory for tpu_custom_call.1']
    #allocation6 [shape = 's32[1]{0}', space=sflag, size = 0x4, scoped, tag = 'scoped memory for tpu_custom_call.1']
    #allocation7 [shape = 'u8[65536]{0}', space=vmem, size = 0x10000, scoped, tag = 'input window, operand 2, single buffered']
    #allocation8 [shape = 's32[1]{0}', space=sflag, size = 0x4, scoped, tag = 'scoped memory for tpu_custom_call.1']
    #allocation9 [shape = 'u8[4096]{0}', space=vmem, size = 0x1000, scoped, tag = 'output window, operand 0, single buffered']
    %10 = vsyncpa [#allocation5], 0
    %11 = vsyncpa [#allocation8], 0
    %12 = vsyncpa [#allocation6], 0
    // Predicated region
    $region2: #{tpu_custom_call.1} parent=1 // pred_check
      _
    $region3: #{tpu_custom_call.1} parent=1 // pred_check_branch
      %14 = sbr.rel (0) target = $region5
    $region4: #{tpu_custom_call.1} parent=1 // pred_region
      %16 = vsyncadd [#allocation5], 0
      %s18 = sshll.u32 %s1, 4
      %s19 = int_to_ptr.hbm [resolvable:$true] %s18
      %s20 = sshll.u32 [#allocation4], 4
      %s21 = int_to_ptr.vmem [resolvable:$true] %s20
      %23 = dma.hbm_to_vmem [thread:$0]  %s19, 128, %s21, [#allocation5]
    $region5: #{tpu_custom_call.1} parent=1 // pred_fallthru
      _
    // Predicated region
    $region6: #{tpu_custom_call.1} parent=1 // pred_check
      _
    $region7: #{tpu_custom_call.1} parent=1 // pred_check_branch
      %25 = sbr.rel (0) target = $region9
    $region8: #{tpu_custom_call.1} parent=1 // pred_region
      %27 = vsyncadd [#allocation8], 0
      %s28 = sshll.u32 %s2, 4
      %s29 = int_to_ptr.hbm [resolvable:$true] %s28
      %s30 = sshll.u32 [#allocation7], 4
      %s31 = int_to_ptr.vmem [resolvable:$true] %s30
      %36 = dma.hbm_to_vmem [thread:$0]  %s29, 2048, %s31, [#allocation8], 128, 128, 8
    $region9: #{tpu_custom_call.1} parent=1 // pred_fallthru
      _
    // Predicated region
    $region10: #{tpu_custom_call.1} parent=1 // pred_check
      _
    $region11: #{tpu_custom_call.1} parent=1 // pred_check_branch
      %38 = sbr.rel (0) target = $region13
    $region12: #{tpu_custom_call.1} parent=1 // pred_region
      _
    $region13: #{tpu_custom_call.1} parent=1 // pred_fallthru
      _
    // Predicated region
    $region14: #{tpu_custom_call.1} parent=1 // pred_check
      _
    $region15: #{tpu_custom_call.1} parent=1 // pred_check_branch
      %40 = sbr.rel (0) target = $region17
    $region16: #{tpu_custom_call.1} parent=1 // pred_region
      %42 = dma.done [#allocation5], 128
    $region17: #{tpu_custom_call.1} parent=1 // pred_fallthru
      _
    // Predicated region
    $region18: #{tpu_custom_call.1} parent=1 // pred_check
      _
    $region19: #{tpu_custom_call.1} parent=1 // pred_check_branch
      %44 = sbr.rel (0) target = $region21
    $region20: #{tpu_custom_call.1} parent=1 // pred_region
      %46 = dma.done [#allocation8], 2048
    $region21: #{tpu_custom_call.1} parent=1 // pred_fallthru
      _
    %p47 = scmp.eq.s32.totalorder 0, 0
    // Predicated region
    $region22: #{tpu_custom_call.1} parent=1 // pred_check
      %p48 = pneg %p47
    $region23: #{tpu_custom_call.1} parent=1 // pred_check_branch
      %50 = sbr.rel (%p48) target = $region25
    $region24: #{tpu_custom_call.1} parent=1 // pred_region
      %51 = vst [vmem:[#allocation9] sm:$0xff] 0.0
    $region25: #{tpu_custom_call.1} parent=1 // pred_fallthru
      _
    %v52 = vld [vmem:[#allocation9] sm:$0xff]
    %v53 = vld [vmem:[#allocation4] sm:$0xff]
    %v54 = vld [vmem:[#allocation7] sm:$0xff]
    %v55 = vld [vmem:[#allocation7 + $0x8] sm:$0xff]
    %v56 = vld [vmem:[#allocation7 + $0x10] sm:$0xff]
    %v57 = vld [vmem:[#allocation7 + $0x18] sm:$0xff]
    %v58 = vld [vmem:[#allocation7 + $0x20] sm:$0xff]
    %v59 = vld [vmem:[#allocation7 + $0x28] sm:$0xff]
    %v60 = vld [vmem:[#allocation7 + $0x30] sm:$0xff]
    %v61 = vld [vmem:[#allocation7 + $0x38] sm:$0xff]
    %v62 = vld [vmem:[#allocation7 + $0x40] sm:$0xff]
    %v63 = vld [vmem:[#allocation7 + $0x48] sm:$0xff]
    %v64 = vld [vmem:[#allocation7 + $0x50] sm:$0xff]
    %v65 = vld [vmem:[#allocation7 + $0x58] sm:$0xff]
    %v66 = vld [vmem:[#allocation7 + $0x60] sm:$0xff]
    %v67 = vld [vmem:[#allocation7 + $0x68] sm:$0xff]
    %v68 = vld [vmem:[#allocation7 + $0x70] sm:$0xff]
    %v69 = vld [vmem:[#allocation7 + $0x78] sm:$0xff]
    %70 = vmatpush.msra.mxu0 %v69
    %71 = vmatpush.msra.mxu0 %v68
    %72 = vmatpush.msra.mxu0 %v67
    %73 = vmatpush.msra.mxu0 %v66
    %74 = vmatpush.msra.mxu0 %v65
    %75 = vmatpush.msra.mxu0 %v64
    %76 = vmatpush.msra.mxu0 %v63
    %77 = vmatpush.msra.mxu0 %v62
    %78 = vmatpush.msra.mxu0 %v61
    %79 = vmatpush.msra.mxu0 %v60
    %80 = vmatpush.msra.mxu0 %v59
    %81 = vmatpush.msra.mxu0 %v58
    %82 = vmatpush.msra.mxu0 %v57
    %83 = vmatpush.msra.mxu0 %v56
    %84 = vmatpush.msra.mxu0 %v55
    %85 = vmatpush.msra.mxu0 %v54
    %86 = vmatmul.f32.gmra.mxu0 %v53
    %v87 = vpop.f32.mrf.mxu0
    %v88 = vadd.f32 0.0, %v87
    %89 = vdwg.mxu0
    %v90 = vadd.f32 %v52, %v88
    %91 = vst [vmem:[#allocation9] sm:$0xff] %v90
    // Predicated region
    $region26: #{tpu_custom_call.1} parent=1 // pred_check
      %p92 = pneg %p47
    $region27: #{tpu_custom_call.1} parent=1 // pred_check_branch
      %94 = sbr.rel (%p92) target = $region29
    $region28: #{tpu_custom_call.1} parent=1 // pred_region
      %v95 = vld [vmem:[#allocation9] sm:$0xff]
      %v96 = vld [vmem:[%s3] sm:$0x1]
      %v98 = vperm.slane %v96, 0
      %v100 = vadd.f32 %v95, %v98
      %v101 = vmax.f32 %v100, 0.0
      %102 = vst [vmem:[#allocation9] sm:$0xff] %v101
    $region29: #{tpu_custom_call.1} parent=1 // pred_fallthru
      _
    // Predicated region
    $region30: #{tpu_custom_call.1} parent=1 // pred_check
      _
    $region31: #{tpu_custom_call.1} parent=1 // pred_check_branch
      %104 = sbr.rel (0) target = $region33
    $region32: #{tpu_custom_call.1} parent=1 // pred_region
      %106 = vsyncadd [#allocation6], 0
      %s108 = sshll.u32 [#allocation9], 4
      %s109 = int_to_ptr.vmem [resolvable:$true] %s108
      %s110 = sshll.u32 %s4, 4
      %s111 = int_to_ptr.hbm [resolvable:$true] %s110
      %113 = dma.vmem_to_hbm [thread:$0]  %s109, 128, %s111, [#allocation6]
    $region33: #{tpu_custom_call.1} parent=1 // pred_fallthru
      _
    // Predicated region
    $region34: #{tpu_custom_call.1} parent=1 // pred_check
      _
    $region35: #{tpu_custom_call.1} parent=1 // pred_check_branch
      %115 = sbr.rel (0) target = $region37
    $region36: #{tpu_custom_call.1} parent=1 // pred_region
      %117 = dma.done [#allocation6], 128
    $region37: #{tpu_custom_call.1} parent=1 // pred_fallthru
      _
    %118 = vsyncpa [#allocation5], 1
    %119 = vsyncpa [#allocation8], 1
    %120 = vsyncpa [#allocation6], 1

</llo_original>
